<compile_context>
chip_gen: v6e
topology: v6e:2x2x1
jax: 0.10.0
libtpu: 0.0.40
codegen_flags: <defaults>
</compile_context>

<pallas_src>
import jax
import jax.numpy as jnp
from jax.experimental import pallas as pl
from jax.experimental.pallas import tpu as pltpu


_GATHER_INFLIGHT = 8       # in-flight row DMAs per table (ring of DMA sems)
_ONEHOT_MAX_ROWS = 512     # use the one-hot MXU path when both padded tables fit this


def _round_up(x, m):
    return (x + m - 1) // m * m


# --------------------------------------------------------------------------- #
# Kernel 1: one-hot MXU path (small internal tables, VMEM resident).
# --------------------------------------------------------------------------- #
def _onehot_kernel(t_ids_ref, f_ids_ref, t_tab_ref, f_tab_ref, o_ref):
    tok = o_ref.shape[0]
    vt = t_tab_ref.shape[0]
    vf = f_tab_ref.shape[0]
    dtype = o_ref.dtype

    t_ids = t_ids_ref[...]                                   # (TOK, 1) int32
    f_ids = f_ids_ref[...]                                   # (TOK, 1) int32
    # Lane-iota == row-id -> (TOK, V) one-hot; selection happens on the MXU.
    oh_t = (jax.lax.broadcasted_iota(jnp.int32, (tok, vt), 1) == t_ids).astype(dtype)
    oh_f = (jax.lax.broadcasted_iota(jnp.int32, (tok, vf), 1) == f_ids).astype(dtype)

    acc = jnp.dot(oh_t, t_tab_ref[...], preferred_element_type=jnp.float32)
    acc = acc + jnp.dot(oh_f, f_tab_ref[...], preferred_element_type=jnp.float32)
    o_ref[...] = acc.astype(dtype)


# --------------------------------------------------------------------------- #
# Kernel 2: HBM row-gather path (tables stay in HBM; DMA gather into slabs,
# then one dense add + one dense store).
# --------------------------------------------------------------------------- #
def _gather_kernel(t_ids_ref, f_ids_ref, t_tab_hbm, f_tab_hbm, o_ref,
                   t_slab, f_slab, sems):
    tok = o_ref.shape[0]

    def issue(r):
        slot = r % _GATHER_INFLIGHT
        ti = t_ids_ref[r]
        fi = f_ids_ref[r]
        pltpu.make_async_copy(t_tab_hbm.at[pl.ds(ti, 1), :],
                              t_slab.at[pl.ds(r, 1), :],
                              sems.at[0, slot]).start()
        pltpu.make_async_copy(f_tab_hbm.at[pl.ds(fi, 1), :],
                              f_slab.at[pl.ds(r, 1), :],
                              sems.at[1, slot]).start()

    def wait(r):
        slot = r % _GATHER_INFLIGHT
        # Descriptor only needs matching transfer size + semaphore.
        pltpu.make_async_copy(t_tab_hbm.at[pl.ds(0, 1), :],
                              t_slab.at[pl.ds(r, 1), :],
                              sems.at[0, slot]).wait()
        pltpu.make_async_copy(f_tab_hbm.at[pl.ds(0, 1), :],
                              f_slab.at[pl.ds(r, 1), :],
                              sems.at[1, slot]).wait()

    # Prime the DMA ring (TOK is always >= _GATHER_INFLIGHT).
    @pl.loop(0, _GATHER_INFLIGHT)
    def _(r):
        issue(r)

    @pl.loop(0, tok)
    def _(r):
        wait(r)

        @pl.when(r + _GATHER_INFLIGHT < tok)
        def _():
            issue(r + _GATHER_INFLIGHT)

    # One dense (TOK, D) add and one dense, unmasked store.
    o_ref[...] = (t_slab[...] + f_slab[...]).astype(o_ref.dtype)


# --------------------------------------------------------------------------- #
# pallas_call builders.
# --------------------------------------------------------------------------- #
def _onehot_call(t_rows, f_rows, t_tab, f_tab, *, TOK, N_pad, D_pad,
                 num_blocks, vmem_limit):
    dtype = t_tab.dtype
    itemsize = int(dtype.itemsize)
    Vt_pad = t_tab.shape[0]
    Vf_pad = f_tab.shape[0]
    t_ids = t_rows.reshape(N_pad, 1)
    f_ids = f_rows.reshape(N_pad, 1)

    cost = pl.CostEstimate(
        flops=int(2 * N_pad * (Vt_pad + Vf_pad) * D_pad),
        transcendentals=0,
        bytes_accessed=int(N_pad * D_pad * itemsize
                           + (Vt_pad + Vf_pad) * D_pad * itemsize
                           + 2 * N_pad * 4),
    )

    def run(single_buffer_tables):
        # Constant-index tables: request single buffering so each table takes
        # 1x (not 2x) VMEM - matters for v7x's 64 MiB/TC budget.
        tbl_kw = ({"pipeline_mode": pl.Buffered(1)}
                  if single_buffer_tables else {})
        grid_spec = pltpu.PrefetchScalarGridSpec(
            num_scalar_prefetch=0,
            grid=(num_blocks,),
            in_specs=[
                pl.BlockSpec((TOK, 1), lambda i: (i, 0)),
                pl.BlockSpec((TOK, 1), lambda i: (i, 0)),
                pl.BlockSpec((Vt_pad, D_pad), lambda i: (0, 0), **tbl_kw),
                pl.BlockSpec((Vf_pad, D_pad), lambda i: (0, 0), **tbl_kw),
            ],
            out_specs=pl.BlockSpec((TOK, D_pad), lambda i: (i, 0)),
        )
        return pl.pallas_call(
            _onehot_kernel,
            out_shape=jax.ShapeDtypeStruct((N_pad, D_pad), dtype),
            grid_spec=grid_spec,
            compiler_params=pltpu.CompilerParams(
                dimension_semantics=("parallel",),
                vmem_limit_bytes=vmem_limit),
            cost_estimate=cost,
        )(t_ids, f_ids, t_tab, f_tab)

    try:
        return run(True)
    except Exception:
        # Some Pallas versions reject Buffered(1); double-buffered tables are
        # still correct, just 2x the table VMEM footprint.
        return run(False)


def _gather_call(t_rows, f_rows, t_tab, f_tab, *, TOK, N_pad, D_pad,
                 num_blocks, vmem_limit):
    dtype = t_tab.dtype
    itemsize = int(dtype.itemsize)

    cost = pl.CostEstimate(
        flops=int(N_pad * D_pad),
        transcendentals=0,
        # per-token row reads from HBM + dense output write + indices
        bytes_accessed=int(3 * N_pad * D_pad * itemsize + 2 * N_pad * 4),
    )

    grid_spec = pltpu.PrefetchScalarGridSpec(
        num_scalar_prefetch=0,
        grid=(num_blocks,),
        in_specs=[
            # Per-block (TOK,) row ids in SMEM (pipelined with the grid).
            pl.BlockSpec((TOK,), lambda i: (i,),
                         memory_space=pltpu.MemorySpace.SMEM),
            pl.BlockSpec((TOK,), lambda i: (i,),
                         memory_space=pltpu.MemorySpace.SMEM),
            # Tables never enter VMEM wholesale: rows are DMA-gathered.
            pl.BlockSpec(memory_space=pl.ANY),
            pl.BlockSpec(memory_space=pl.ANY),
        ],
        out_specs=pl.BlockSpec((TOK, D_pad), lambda i: (i, 0)),
        scratch_shapes=[
            pltpu.VMEM((TOK, D_pad), dtype),            # trainable row slab
            pltpu.VMEM((TOK, D_pad), dtype),            # frozen row slab
            pltpu.SemaphoreType.DMA((2, _GATHER_INFLIGHT)),
        ],
    )
    return pl.pallas_call(
        _gather_kernel,
        out_shape=jax.ShapeDtypeStruct((N_pad, D_pad), dtype),
        grid_spec=grid_spec,
        compiler_params=pltpu.CompilerParams(
            dimension_semantics=("parallel",),
            vmem_limit_bytes=vmem_limit),
        cost_estimate=cost,
    )(t_rows, f_rows, t_tab, f_tab)


# --------------------------------------------------------------------------- #
# Public wrapper.
# --------------------------------------------------------------------------- #
def semi_frozen_embedding_forward(token_ids, trainable_weight, frozen_weight,
                                  trainable_map, frozen_map, *,
                                  tok_block=1024, force_path=None):
    """out[b,s] = trainable_weight[trainable_map[tok]] + frozen_weight[frozen_map[tok]].

    Note: out-of-range token ids are clamped by the XLA map gather in this
    wrapper (PyTorch nn.Embedding would raise instead).
    """
    assert trainable_weight.dtype == frozen_weight.dtype
    B, S = token_ids.shape
    Vt, D = trainable_weight.shape
    Vf, Df = frozen_weight.shape
    assert Df == D
    dtype = trainable_weight.dtype
    itemsize = int(dtype.itemsize)
    N = B * S

    # Fuse the vocab -> internal-row map lookups here: O(N) int32 arrays
    # instead of O(vocab) maps living in SMEM.
    tok_flat = token_ids.reshape(N).astype(jnp.int32)
    t_rows = trainable_map.astype(jnp.int32)[tok_flat]
    f_rows = frozen_map.astype(jnp.int32)[tok_flat]

    # Pad feature dim to a lane multiple and table rows to a sublane multiple
    # so every block / store is (8, 128)-tile dense.
    D_pad = _round_up(D, 128)
    Vt_pad = _round_up(Vt, 8)
    Vf_pad = _round_up(Vf, 8)
    t_tab = trainable_weight
    f_tab = frozen_weight
    if (Vt_pad, D_pad) != (Vt, D):
        t_tab = jnp.pad(t_tab, ((0, Vt_pad - Vt), (0, D_pad - D)))
    if (Vf_pad, D_pad) != (Vf, D):
        f_tab = jnp.pad(f_tab, ((0, Vf_pad - Vf), (0, D_pad - D)))

    # Chip-aware VMEM budget: full per-core capacity minus headroom (no hard
    # 64 MiB clamp on v5e/v6e; headroom for compiler scratch on v7x).
    try:
        info = pltpu.get_tpu_info()
        vmem_cap = int(getattr(info, "vmem_capacity_bytes", 128 * 2 ** 20))
    except Exception:
        vmem_cap = 128 * 2 ** 20
    vmem_limit = int(max(32 * 2 ** 20, vmem_cap - 16 * 2 ** 20))

    # Token block: as large as possible (amortize ~0.35us/grid-step), multiple
    # of 8 sublanes, and bounded so slabs + double-buffered output blocks fit
    # comfortably inside the VMEM budget.
    TOK = min(tok_block, _round_up(N, 8))
    max_tok = max(8, (vmem_limit // 2) // (4 * D_pad * itemsize) // 8 * 8)
    TOK = max(8, min(TOK, max_tok))
    N_pad = _round_up(N, TOK)
    if N_pad != N:
        pad = N_pad - N
        # Padded tail positions map to internal row 0 (the zero row).
        t_rows = jnp.pad(t_rows, (0, pad))
        f_rows = jnp.pad(f_rows, (0, pad))
    num_blocks = N_pad // TOK

    use_onehot = (Vt_pad <= _ONEHOT_MAX_ROWS) and (Vf_pad <= _ONEHOT_MAX_ROWS)
    if force_path == "onehot":
        use_onehot = True
    elif force_path == "gather":
        use_onehot = False

    if use_onehot:
        out = _onehot_call(t_rows, f_rows, t_tab, f_tab,
                           TOK=TOK, N_pad=N_pad, D_pad=D_pad,
                           num_blocks=num_blocks, vmem_limit=vmem_limit)
    else:
        out = _gather_call(t_rows, f_rows, t_tab, f_tab,
                           TOK=TOK, N_pad=N_pad, D_pad=D_pad,
                           num_blocks=num_blocks, vmem_limit=vmem_limit)

    return out[:N, :D].reshape(B, S, D)


# --------------------------------------------------------------------------- #
# Parameter construction (mirrors SemiFrozenEmbedding.__init__).
# --------------------------------------------------------------------------- #
def build_semi_frozen_params(num_emb, emb_dim, padding_idx, _weight, frozen_ids=None):
    frozen_ids = list(frozen_ids) if frozen_ids is not None else []
    frozen_set = set(frozen_ids)
    trainable_ids = [x for x in range(num_emb) if x not in frozen_set]
    if padding_idx in trainable_ids:
        trainable_ids.remove(padding_idx)
    if padding_idx in frozen_ids:
        frozen_ids.remove(padding_idx)

    zero_row = jnp.zeros((1, emb_dim), dtype=_weight.dtype)
    if frozen_ids:
        f_idx = jnp.asarray(frozen_ids, dtype=jnp.int32)
        frozen_weight = jnp.concatenate([zero_row, _weight[f_idx]], axis=0)
    else:
        f_idx = None
        frozen_weight = zero_row
    if trainable_ids:
        t_idx = jnp.asarray(trainable_ids, dtype=jnp.int32)
        trainable_weight = jnp.concatenate([zero_row, _weight[t_idx]], axis=0)
    else:
        t_idx = None
        trainable_weight = zero_row

    trainable_map = jnp.zeros((num_emb,), dtype=jnp.int32)
    frozen_map = jnp.zeros((num_emb,), dtype=jnp.int32)
    if f_idx is not None:
        frozen_map = frozen_map.at[f_idx].set(
            jnp.arange(1, len(frozen_ids) + 1, dtype=jnp.int32))
    if t_idx is not None:
        trainable_map = trainable_map.at[t_idx].set(
            jnp.arange(1, len(trainable_ids) + 1, dtype=jnp.int32))
    return trainable_weight, frozen_weight, trainable_map, frozen_map


if __name__ == "__main__":
    num_emb, emb_dim = 16, 128
    padding_idx = 0
    frozen_ids = [1, 2, 3, 5]
    B, S = 2, 9   # N = 18 -> exercises the padded token tail

    key = jax.random.PRNGKey(0)
    k_w, k_tok = jax.random.split(key)
    _weight = jax.random.normal(k_w, (num_emb, emb_dim), dtype=jnp.float32)
    token_ids = jax.random.randint(k_tok, (B, S), 0, num_emb, dtype=jnp.int32)
    token_ids = token_ids.at[0, 0].set(padding_idx)   # ensure padding id occurs

    tw, fw, tmap, fmap = build_semi_frozen_params(
        num_emb, emb_dim, padding_idx, _weight, frozen_ids)

    # Pure-JAX reference (same semantics as the PyTorch forward).
    ref = tw[tmap[token_ids]] + fw[fmap[token_ids]]

    # Path 1: one-hot MXU path (auto-selected for this small internal vocab).
    # Tolerance allows for the MXU's f32 matmul precision; the exact-gather
    # semantics are checked bit-tightly on path 2 below.
    out1 = jax.block_until_ready(
        semi_frozen_embedding_forward(token_ids, tw, fw, tmap, fmap))
    assert out1.shape == (B, S, emb_dim)
    assert jnp.allclose(out1, ref, rtol=5e-3, atol=1e-5), "one-hot path mismatch"

    # Path 2: HBM row-gather path (forced; small tok_block exercises the
    # multi-block grid, SMEM id streaming and the DMA ring).
    out2 = jax.block_until_ready(
        semi_frozen_embedding_forward(token_ids, tw, fw, tmap, fmap,
                                      tok_block=8, force_path="gather"))
    assert out2.shape == (B, S, emb_dim)
    assert jnp.allclose(out2, ref, rtol=1e-6, atol=1e-6), "gather path mismatch"

    print("KERNEL_OK")
</pallas_src>

<mosaic_0001>
module attributes {stable_mosaic.version = 11 : i64} {
  func.func @_onehot_kernel(%arg0: i32, %arg1: memref<24x1xi32, #tpu.memory_space<vmem>>, %arg2: memref<24x1xi32, #tpu.memory_space<vmem>>, %arg3: memref<16x128xf32, #tpu.memory_space<vmem>>, %arg4: memref<8x128xf32, #tpu.memory_space<vmem>>, %arg5: memref<24x128xf32, #tpu.memory_space<vmem>>) attributes {dimension_semantics = [#tpu.dimension_semantics<parallel>], iteration_bounds = array<i64: 1>, scalar_prefetch = 0 : i64, scratch_operands = 0 : i64, tpu.core_type = #tpu.core_type<tc>, window_params = [{transform_indices = @transform_0, window_bounds = array<i64: 24, 1>}, {transform_indices = @transform_1, window_bounds = array<i64: 24, 1>}, {pipeline_mode = #tpu.pipeline_mode<synchronous>, transform_indices = @transform_2, window_bounds = array<i64: 16, 128>}, {pipeline_mode = #tpu.pipeline_mode<synchronous>, transform_indices = @transform_3, window_bounds = array<i64: 8, 128>}, {transform_indices = @transform_4, window_bounds = array<i64: 24, 128>}]} {
    %c0 = arith.constant 0 : index
    %c0_0 = arith.constant 0 : index
    %0 = vector.load %arg1[%c0, %c0_0] : memref<24x1xi32, #tpu.memory_space<vmem>>, vector<24x1xi32>
    %c0_1 = arith.constant 0 : index
    %c0_2 = arith.constant 0 : index
    %1 = vector.load %arg2[%c0_1, %c0_2] : memref<24x1xi32, #tpu.memory_space<vmem>>, vector<24x1xi32>
    %2 = tpu.iota {dimensions = array<i32: 1>} : vector<24x16xi32>
    %3 = vector.broadcast %0 : vector<24x1xi32> to vector<24x16xi32>
    %4 = arith.cmpi eq, %2, %3 : vector<24x16xi32>
    %5 = arith.extui %4 : vector<24x16xi1> to vector<24x16xi32>
    %6 = arith.sitofp %5 : vector<24x16xi32> to vector<24x16xf32>
    %7 = tpu.iota {dimensions = array<i32: 1>} : vector<24x8xi32>
    %8 = vector.broadcast %1 : vector<24x1xi32> to vector<24x8xi32>
    %9 = arith.cmpi eq, %7, %8 : vector<24x8xi32>
    %10 = arith.extui %9 : vector<24x8xi1> to vector<24x8xi32>
    %11 = arith.sitofp %10 : vector<24x8xi32> to vector<24x8xf32>
    %c0_3 = arith.constant 0 : index
    %c0_4 = arith.constant 0 : index
    %12 = vector.load %arg3[%c0_3, %c0_4] : memref<16x128xf32, #tpu.memory_space<vmem>>, vector<16x128xf32>
    %cst = arith.constant dense<0.000000e+00> : vector<24x128xf32>
    %13 = tpu.matmul %6, %12, %cst {dimension_numbers = #tpu.dot_dimension_numbers<[1], [0], [0], [1], [0, 0, 1, 1], [], []>} : vector<24x16xf32>, vector<16x128xf32>, vector<24x128xf32> -> vector<24x128xf32>
    %c0_5 = arith.constant 0 : index
    %c0_6 = arith.constant 0 : index
    %14 = vector.load %arg4[%c0_5, %c0_6] : memref<8x128xf32, #tpu.memory_space<vmem>>, vector<8x128xf32>
    %cst_7 = arith.constant dense<0.000000e+00> : vector<24x128xf32>
    %15 = tpu.matmul %11, %14, %cst_7 {dimension_numbers = #tpu.dot_dimension_numbers<[1], [0], [0], [1], [0, 0, 1, 1], [], []>} : vector<24x8xf32>, vector<8x128xf32>, vector<24x128xf32> -> vector<24x128xf32>
    %16 = arith.addf %13, %15 : vector<24x128xf32>
    %c0_8 = arith.constant 0 : index
    %c0_9 = arith.constant 0 : index
    %17 = vector.load %arg5[%c0_8, %c0_9] : memref<24x128xf32, #tpu.memory_space<vmem>>, vector<24x128xf32>
    tpu.vector_store %arg5[%c0_8, %c0_9], %16 {strides = array<i32>} : memref<24x128xf32, #tpu.memory_space<vmem>>, vector<24x128xf32>,
    return
  }
  func.func @transform_0(%arg0: i32) -> (i32, i32) {
    %c0_i32 = arith.constant 0 : i32
    %c0_i32_0 = arith.constant 0 : i32
    return %arg0, %c0_i32 : i32, i32
  }
  func.func @transform_1(%arg0: i32) -> (i32, i32) {
    %c0_i32 = arith.constant 0 : i32
    %c0_i32_0 = arith.constant 0 : i32
    return %arg0, %c0_i32 : i32, i32
  }
  func.func @transform_2(%arg0: i32) -> (i32, i32) {
    %c0_i32 = arith.constant 0 : i32
    %c0_i32_0 = arith.constant 0 : i32
    %c0_i32_1 = arith.constant 0 : i32
    return %c0_i32, %c0_i32_0 : i32, i32
  }
  func.func @transform_3(%arg0: i32) -> (i32, i32) {
    %c0_i32 = arith.constant 0 : i32
    %c0_i32_0 = arith.constant 0 : i32
    %c0_i32_1 = arith.constant 0 : i32
    return %c0_i32, %c0_i32_0 : i32, i32
  }
  func.func @transform_4(%arg0: i32) -> (i32, i32) {
    %c0_i32 = arith.constant 0 : i32
    %c0_i32_0 = arith.constant 0 : i32
    return %arg0, %c0_i32 : i32, i32
  }
}

module attributes {stable_mosaic.version = 11 : i64} {
  func.func @_onehot_kernel(%arg0: i32, %arg1: memref<24x1xi32, #tpu.memory_space<vmem>>, %arg2: memref<24x1xi32, #tpu.memory_space<vmem>>, %arg3: memref<16x128xf32, #tpu.memory_space<vmem>>, %arg4: memref<8x128xf32, #tpu.memory_space<vmem>>, %arg5: memref<24x128xf32, #tpu.memory_space<vmem>>) attributes {dimension_semantics = [#tpu.dimension_semantics<parallel>], iteration_bounds = array<i64: 1>, scalar_prefetch = 0 : i64, scratch_operands = 0 : i64, tpu.core_type = #tpu.core_type<tc>, window_params = [{transform_indices = @transform_0, window_bounds = array<i64: 24, 1>}, {transform_indices = @transform_1, window_bounds = array<i64: 24, 1>}, {pipeline_mode = #tpu.pipeline_mode<synchronous>, transform_indices = @transform_2, window_bounds = array<i64: 16, 128>}, {pipeline_mode = #tpu.pipeline_mode<synchronous>, transform_indices = @transform_3, window_bounds = array<i64: 8, 128>}, {transform_indices = @transform_4, window_bounds = array<i64: 24, 128>}]} {
    %c0 = arith.constant 0 : index
    %c0_0 = arith.constant 0 : index
    %0 = vector.load %arg1[%c0, %c0_0] : memref<24x1xi32, #tpu.memory_space<vmem>>, vector<24x1xi32>
    %c0_1 = arith.constant 0 : index
    %c0_2 = arith.constant 0 : index
    %1 = vector.load %arg2[%c0_1, %c0_2] : memref<24x1xi32, #tpu.memory_space<vmem>>, vector<24x1xi32>
    %2 = tpu.iota {dimensions = array<i32: 1>} : vector<24x16xi32>
    %3 = vector.broadcast %0 : vector<24x1xi32> to vector<24x16xi32>
    %4 = arith.cmpi eq, %2, %3 : vector<24x16xi32>
    %5 = arith.extui %4 : vector<24x16xi1> to vector<24x16xi32>
    %6 = arith.sitofp %5 : vector<24x16xi32> to vector<24x16xf32>
    %7 = tpu.iota {dimensions = array<i32: 1>} : vector<24x8xi32>
    %8 = vector.broadcast %1 : vector<24x1xi32> to vector<24x8xi32>
    %9 = arith.cmpi eq, %7, %8 : vector<24x8xi32>
    %10 = arith.extui %9 : vector<24x8xi1> to vector<24x8xi32>
    %11 = arith.sitofp %10 : vector<24x8xi32> to vector<24x8xf32>
    %c0_3 = arith.constant 0 : index
    %c0_4 = arith.constant 0 : index
    %12 = vector.load %arg3[%c0_3, %c0_4] : memref<16x128xf32, #tpu.memory_space<vmem>>, vector<16x128xf32>
    %cst = arith.constant dense<0.000000e+00> : vector<24x128xf32>
    %13 = tpu.matmul %6, %12, %cst {dimension_numbers = #tpu.dot_dimension_numbers<[1], [0], [0], [1], [0, 0, 1, 1], [], []>} : vector<24x16xf32>, vector<16x128xf32>, vector<24x128xf32> -> vector<24x128xf32>
    %c0_5 = arith.constant 0 : index
    %c0_6 = arith.constant 0 : index
    %14 = vector.load %arg4[%c0_5, %c0_6] : memref<8x128xf32, #tpu.memory_space<vmem>>, vector<8x128xf32>
    %cst_7 = arith.constant dense<0.000000e+00> : vector<24x128xf32>
    %15 = tpu.matmul %11, %14, %cst_7 {dimension_numbers = #tpu.dot_dimension_numbers<[1], [0], [0], [1], [0, 0, 1, 1], [], []>} : vector<24x8xf32>, vector<8x128xf32>, vector<24x128xf32> -> vector<24x128xf32>
    %16 = arith.addf %13, %15 : vector<24x128xf32>
    %c0_8 = arith.constant 0 : index
    %c0_9 = arith.constant 0 : index
    %17 = vector.load %arg5[%c0_8, %c0_9] : memref<24x128xf32, #tpu.memory_space<vmem>>, vector<24x128xf32>
    tpu.vector_store %arg5[%c0_8, %c0_9], %16 {strides = array<i32>} : memref<24x128xf32, #tpu.memory_space<vmem>>, vector<24x128xf32>,
    return
  }
  func.func @transform_0(%arg0: i32) -> (i32, i32) {
    %c0_i32 = arith.constant 0 : i32
    %c0_i32_0 = arith.constant 0 : i32
    return %arg0, %c0_i32 : i32, i32
  }
  func.func @transform_1(%arg0: i32) -> (i32, i32) {
    %c0_i32 = arith.constant 0 : i32
    %c0_i32_0 = arith.constant 0 : i32
    return %arg0, %c0_i32 : i32, i32
  }
  func.func @transform_2(%arg0: i32) -> (i32, i32) {
    %c0_i32 = arith.constant 0 : i32
    %c0_i32_0 = arith.constant 0 : i32
    %c0_i32_1 = arith.constant 0 : i32
    return %c0_i32, %c0_i32_0 : i32, i32
  }
  func.func @transform_3(%arg0: i32) -> (i32, i32) {
    %c0_i32 = arith.constant 0 : i32
    %c0_i32_0 = arith.constant 0 : i32
    %c0_i32_1 = arith.constant 0 : i32
    return %c0_i32, %c0_i32_0 : i32, i32
  }
  func.func @transform_4(%arg0: i32) -> (i32, i32) {
    %c0_i32 = arith.constant 0 : i32
    %c0_i32_0 = arith.constant 0 : i32
    return %arg0, %c0_i32 : i32, i32
  }
}

</mosaic_0001>

<llo_original>
// kernel: tpu_custom_call.1
$region0: #{tpu_custom_call.1}
  #allocation0 [shape = 'u32[]', space=smem, size = 0x4, offset = 0x4, fixed_abs, tag = 'smem constant byte address 0x4 - core index']
  #allocation1 [shape = 'u32[144,128]{1,0:T(1,128)}', space=vmem, size = 0x12000, scoped, tag = 'internal scratch']
  %s0 = inlined_call_operand.vmem [shape: s32[24,1], index: 0, kind: input, shape index: {}]
  %s1 = inlined_call_operand.vmem [shape: s32[24,1], index: 1, kind: input, shape index: {}]
  %s2 = inlined_call_operand.vmem [shape: f32[16,128], index: 2, kind: input, shape index: {}]
  %s3 = inlined_call_operand.vmem [shape: f32[8,128], index: 3, kind: input, shape index: {}]
  %s4 = inlined_call_operand.hbm [shape: f32[24,128], index: 4, kind: output, shape index: {}]
  %s5 = sld [smem:[#allocation0]]
  $region26: #{tpu_custom_call.1} parent=0
    _
  %s7 = ssub.s32 1, %s5
  %s8 = scalar_select 0, %s7, %s5
  $region1: #{tpu_custom_call.1} parent=0
    #allocation2 [shape = 'u8[12288]{0}', space=vmem, size = 0x3000, scoped, tag = 'output window, operand 0, single buffered']
    #allocation3 [shape = 's32[1]{0}', space=sflag, size = 0x4, scoped, tag = 'scoped memory for tpu_custom_call.1']
    %9 = vsyncpa [#allocation3], 0
    // Predicated region
    $region2: #{tpu_custom_call.1} parent=1 // pred_check
      _
    $region3: #{tpu_custom_call.1} parent=1 // pred_check_branch
      %11 = sbr.rel (0) target = $region5
    $region4: #{tpu_custom_call.1} parent=1 // pred_region
      _
    $region5: #{tpu_custom_call.1} parent=1 // pred_fallthru
      _
    // Predicated region
    $region6: #{tpu_custom_call.1} parent=1 // pred_check
      _
    $region7: #{tpu_custom_call.1} parent=1 // pred_check_branch
      %13 = sbr.rel (0) target = $region9
    $region8: #{tpu_custom_call.1} parent=1 // pred_region
      _
    $region9: #{tpu_custom_call.1} parent=1 // pred_fallthru
      _
    // Predicated region
    $region10: #{tpu_custom_call.1} parent=1 // pred_check
      _
    $region11: #{tpu_custom_call.1} parent=1 // pred_check_branch
      %15 = sbr.rel (0) target = $region13
    $region12: #{tpu_custom_call.1} parent=1 // pred_region
      _
    $region13: #{tpu_custom_call.1} parent=1 // pred_fallthru
      _
    // Predicated region
    $region14: #{tpu_custom_call.1} parent=1 // pred_check
      _
    $region15: #{tpu_custom_call.1} parent=1 // pred_check_branch
      %17 = sbr.rel (0) target = $region17
    $region16: #{tpu_custom_call.1} parent=1 // pred_region
      _
    $region17: #{tpu_custom_call.1} parent=1 // pred_fallthru
      _
    %v18 = vld [vmem:[%s0] sm:$0xff]
    %v19 = vld [vmem:[%s0 + $0x8] sm:$0xff]
    %v20 = vld [vmem:[%s0 + $0x10] sm:$0xff]
    %v21 = vld [vmem:[%s1] sm:$0xff]
    %v22 = vld [vmem:[%s1 + $0x8] sm:$0xff]
    %v23 = vld [vmem:[%s1 + $0x10] sm:$0xff]
    %v24 = vlaneseq
    %v25 = vand.u32 %v24, 127
    %26 = vset.pattern.permute.xlu0 0
    %27 = vperm.xlu0 %26, %v18
    %v28 = vpop.permute.xlu0 %27
    %29 = vset.pattern.permute.xlu0 0
    %30 = vperm.xlu0 %29, %v19
    %v31 = vpop.permute.xlu0 %30
    %32 = vset.pattern.permute.xlu0 0
    %33 = vperm.xlu0 %32, %v20
    %v34 = vpop.permute.xlu0 %33
    %vm35 = vcmp.eq.s32.totalorder %v25, %v28
    %vm36 = vcmp.eq.s32.totalorder %v25, %v31
    %vm37 = vcmp.eq.s32.totalorder %v25, %v34
    %v38 = vsel %vm35, 1, 0
    %v39 = vsel %vm36, 1, 0
    %v40 = vsel %vm37, 1, 0
    %v41 = vcvt.s32.f32 %v38
    %v42 = vcvt.s32.f32 %v39
    %v43 = vcvt.s32.f32 %v40
    %44 = vset.pattern.permute.xlu0 0
    %45 = vperm.xlu0 %44, %v21
    %v46 = vpop.permute.xlu0 %45
    %47 = vset.pattern.permute.xlu0 0
    %48 = vperm.xlu0 %47, %v22
    %v49 = vpop.permute.xlu0 %48
    %50 = vset.pattern.permute.xlu0 0
    %51 = vperm.xlu0 %50, %v23
    %v52 = vpop.permute.xlu0 %51
    %vm53 = vcmp.eq.s32.totalorder %v25, %v46
    %vm54 = vcmp.eq.s32.totalorder %v25, %v49
    %vm55 = vcmp.eq.s32.totalorder %v25, %v52
    %v56 = vsel %vm53, 1, 0
    %v57 = vsel %vm54, 1, 0
    %v58 = vsel %vm55, 1, 0
    %v59 = vcvt.s32.f32 %v56
    %v60 = vcvt.s32.f32 %v57
    %v61 = vcvt.s32.f32 %v58
    %v62 = vld [vmem:[%s2] sm:$0xff]
    %v63 = vld [vmem:[%s2 + $0x8] sm:$0xff]
    %v64 = vld [vmem:[%s3] sm:$0xff]
    %vm65 = vcmask 64512
    %v67 = vsel %vm65, %v59, 0
    %v70 = vsel %vm65, %v60, 0
    %v73 = vsel %vm65, %v61, 0
    %75 = vmatprep.subr.mxu0 0.0
    %76 = vmatpush1.msra.mxu0 0.0
    %77 = vmatprep.subr.mxu0 0.0
    %78 = vmatpush1.msra.mxu0 0.0
    %79 = vmatprep.subr.mxu0 0.0
    %80 = vmatpush1.msra.mxu0 0.0
    %81 = vmatprep.subr.mxu0 0.0
    %82 = vmatpush1.msra.mxu0 0.0
    %83 = vmatprep.subr.mxu0 0.0
    %84 = vmatpush1.msra.mxu0 0.0
    %85 = vmatprep.subr.mxu0 0.0
    %86 = vmatpush1.msra.mxu0 0.0
    %87 = vmatprep.subr.mxu0 0.0
    %88 = vmatpush1.msra.mxu0 0.0
    %89 = vmatprep.subr.mxu0 0.0
    %90 = vmatpush1.msra.mxu0 0.0
    %91 = vmatprep.subr.mxu0 0.0
    %92 = vmatpush1.msra.mxu0 0.0
    %93 = vmatprep.subr.mxu0 0.0
    %94 = vmatpush1.msra.mxu0 0.0
    %95 = vmatprep.subr.mxu0 0.0
    %96 = vmatpush1.msra.mxu0 0.0
    %97 = vmatprep.subr.mxu0 0.0
    %98 = vmatpush1.msra.mxu0 0.0
    %99 = vmatprep.subr.mxu0 0.0
    %100 = vmatpush1.msra.mxu0 0.0
    %101 = vmatprep.subr.mxu0 0.0
    %102 = vmatpush1.msra.mxu0 0.0
    %103 = vmatprep.subr.mxu0 0.0
    %104 = vmatpush1.msra.mxu0 0.0
    %105 = vmatprep.subr.mxu0 0.0
    %106 = vmatpush1.msra.mxu0 %v64
    %107 = vmatprep.subr.mxu0 0.0
    %108 = vmatpush2.msra.mxu0 0.0
    %109 = vmatprep.subr.mxu0 0.0
    %110 = vmatpush2.msra.mxu0 0.0
    %111 = vmatprep.subr.mxu0 0.0
    %112 = vmatpush2.msra.mxu0 0.0
    %113 = vmatprep.subr.mxu0 0.0
    %114 = vmatpush2.msra.mxu0 0.0
    %115 = vmatprep.subr.mxu0 0.0
    %116 = vmatpush2.msra.mxu0 0.0
    %117 = vmatprep.subr.mxu0 0.0
    %118 = vmatpush2.msra.mxu0 0.0
    %119 = vmatprep.subr.mxu0 0.0
    %120 = vmatpush2.msra.mxu0 0.0
    %121 = vmatprep.subr.mxu0 0.0
    %122 = vmatpush2.msra.mxu0 0.0
    %123 = vmatprep.subr.mxu0 0.0
    %124 = vmatpush2.msra.mxu0 0.0
    %125 = vmatprep.subr.mxu0 0.0
    %126 = vmatpush2.msra.mxu0 0.0
    %127 = vmatprep.subr.mxu0 0.0
    %128 = vmatpush2.msra.mxu0 0.0
    %129 = vmatprep.subr.mxu0 0.0
    %130 = vmatpush2.msra.mxu0 0.0
    %131 = vmatprep.subr.mxu0 0.0
    %132 = vmatpush2.msra.mxu0 0.0
    %133 = vmatprep.subr.mxu0 0.0
    %134 = vmatpush2.msra.mxu0 0.0
    %135 = vmatprep.subr.mxu0 0.0
    %136 = vmatpush2.msra.mxu0 0.0
    %137 = vmatprep.subr.mxu0 0.0
    %138 = vmatpush2.msra.mxu0 0.0
    %139 = vmatprep.mubr.f32.mxu0 0.0
    %140 = vmatmul.mubr.f32.gmra.mxu0 %v67
    %v141 = vpop.f32.mrf.mxu0
    %v142 = vadd.f32 0.0, %v141
    %v143 = vpop.f32.mrf.mxu0
    %144 = vmatprep.mubr.f32.mxu0 0.0
    %145 = vmatmul.mubr.f32.gmra.mxu0 %v70
    %v146 = vpop.f32.mrf.mxu0
    %v147 = vadd.f32 0.0, %v146
    %v148 = vpop.f32.mrf.mxu0
    %149 = vmatprep.mubr.f32.mxu0 0.0
    %150 = vmatmul.mubr.f32.gmra.mxu0 %v73
    %v151 = vpop.f32.mrf.mxu0
    %v152 = vadd.f32 0.0, %v151
    %v153 = vpop.f32.mrf.mxu0
    %154 = vdwg.mxu0
    %vm155 = vcmask 130048
    %v157 = vsel %vm155, %v41, 0
    %v160 = vsel %vm155, %v42, 0
    %v163 = vsel %vm155, %v43, 0
    %165 = vmatprep.subr.mxu0 0.0
    %166 = vmatpush1.msra.mxu0 0.0
    %167 = vmatprep.subr.mxu0 0.0
    %168 = vmatpush1.msra.mxu0 0.0
    %169 = vmatprep.subr.mxu0 0.0
    %170 = vmatpush1.msra.mxu0 0.0
    %171 = vmatprep.subr.mxu0 0.0
    %172 = vmatpush1.msra.mxu0 0.0
    %173 = vmatprep.subr.mxu0 0.0
    %174 = vmatpush1.msra.mxu0 0.0
    %175 = vmatprep.subr.mxu0 0.0
    %176 = vmatpush1.msra.mxu0 0.0
    %177 = vmatprep.subr.mxu0 0.0
    %178 = vmatpush1.msra.mxu0 0.0
    %179 = vmatprep.subr.mxu0 0.0
    %180 = vmatpush1.msra.mxu0 0.0
    %181 = vmatprep.subr.mxu0 0.0
    %182 = vmatpush1.msra.mxu0 0.0
    %183 = vmatprep.subr.mxu0 0.0
    %184 = vmatpush1.msra.mxu0 0.0
    %185 = vmatprep.subr.mxu0 0.0
    %186 = vmatpush1.msra.mxu0 0.0
    %187 = vmatprep.subr.mxu0 0.0
    %188 = vmatpush1.msra.mxu0 0.0
    %189 = vmatprep.subr.mxu0 0.0
    %190 = vmatpush1.msra.mxu0 0.0
    %191 = vmatprep.subr.mxu0 0.0
    %192 = vmatpush1.msra.mxu0 0.0
    %193 = vmatprep.subr.mxu0 0.0
    %194 = vmatpush1.msra.mxu0 %v63
    %195 = vmatprep.subr.mxu0 0.0
    %196 = vmatpush1.msra.mxu0 %v62
    %197 = vmatprep.subr.mxu0 0.0
    %198 = vmatpush2.msra.mxu0 0.0
    %199 = vmatprep.subr.mxu0 0.0
    %200 = vmatpush2.msra.mxu0 0.0
    %201 = vmatprep.subr.mxu0 0.0
    %202 = vmatpush2.msra.mxu0 0.0
    %203 = vmatprep.subr.mxu0 0.0
    %204 = vmatpush2.msra.mxu0 0.0
    %205 = vmatprep.subr.mxu0 0.0
    %206 = vmatpush2.msra.mxu0 0.0
    %207 = vmatprep.subr.mxu0 0.0
    %208 = vmatpush2.msra.mxu0 0.0
    %209 = vmatprep.subr.mxu0 0.0
    %210 = vmatpush2.msra.mxu0 0.0
    %211 = vmatprep.subr.mxu0 0.0
    %212 = vmatpush2.msra.mxu0 0.0
    %213 = vmatprep.subr.mxu0 0.0
    %214 = vmatpush2.msra.mxu0 0.0
    %215 = vmatprep.subr.mxu0 0.0
    %216 = vmatpush2.msra.mxu0 0.0
    %217 = vmatprep.subr.mxu0 0.0
    %218 = vmatpush2.msra.mxu0 0.0
    %219 = vmatprep.subr.mxu0 0.0
    %220 = vmatpush2.msra.mxu0 0.0
    %221 = vmatprep.subr.mxu0 0.0
    %222 = vmatpush2.msra.mxu0 0.0
    %223 = vmatprep.subr.mxu0 0.0
    %224 = vmatpush2.msra.mxu0 0.0
    %225 = vmatprep.subr.mxu0 0.0
    %226 = vmatpush2.msra.mxu0 0.0
    %227 = vmatprep.subr.mxu0 0.0
    %228 = vmatpush2.msra.mxu0 0.0
    %229 = vmatprep.mubr.f32.mxu0 0.0
    %230 = vmatmul.mubr.f32.gmra.mxu0 %v157
    %v231 = vpop.f32.mrf.mxu0
    %v232 = vadd.f32 %v142, %v231
    %v233 = vpop.f32.mrf.mxu0
    %234 = vmatprep.mubr.f32.mxu0 0.0
    %235 = vmatmul.mubr.f32.gmra.mxu0 %v160
    %v236 = vpop.f32.mrf.mxu0
    %v237 = vadd.f32 %v147, %v236
    %v238 = vpop.f32.mrf.mxu0
    %239 = vmatprep.mubr.f32.mxu0 0.0
    %240 = vmatmul.mubr.f32.gmra.mxu0 %v163
    %v241 = vpop.f32.mrf.mxu0
    %v242 = vadd.f32 %v152, %v241
    %v243 = vpop.f32.mrf.mxu0
    %244 = vdwg.mxu0
    %245 = vst [vmem:[#allocation2] sm:$0xff] %v232
    %246 = vst [vmem:[#allocation2 + $0x8] sm:$0xff] %v237
    %247 = vst [vmem:[#allocation2 + $0x10] sm:$0xff] %v242
    // Predicated region
    $region18: #{tpu_custom_call.1} parent=1 // pred_check
      _
    $region19: #{tpu_custom_call.1} parent=1 // pred_check_branch
      %249 = sbr.rel (0) target = $region21
    $region20: #{tpu_custom_call.1} parent=1 // pred_region
      %s251 = ssub.s32 384, 384
      %252 = vsyncadd [#allocation3], %s251
      %s253 = sshll.u32 [#allocation2], 4
      %s254 = int_to_ptr.vmem [resolvable:$true] %s253
      %259 = dma.vmem_to_hbm [thread:$0]  %s254, 384, %s4, [#allocation3], 128, 128, 8
    $region21: #{tpu_custom_call.1} parent=1 // pred_fallthru
      _
    // Predicated region
    $region22: #{tpu_custom_call.1} parent=1 // pred_check
      _
    $region23: #{tpu_custom_call.1} parent=1 // pred_check_branch
      %261 = sbr.rel (0) target = $region25
    $region24: #{tpu_custom_call.1} parent=1 // pred_region
      %262 = dma.done [#allocation3], 384
    $region25: #{tpu_custom_call.1} parent=1 // pred_fallthru
      _
    %263 = vsyncpa [#allocation3], 1

// kernel: tpu_custom_call.1
$region0: #{tpu_custom_call.1}
  #allocation0 [shape = 'u32[]', space=smem, size = 0x4, offset = 0x4, fixed_abs, tag = 'smem constant byte address 0x4 - core index']
  #allocation1 [shape = 'u32[144,128]{1,0:T(1,128)}', space=vmem, size = 0x12000, scoped, tag = 'internal scratch']
  %s0 = inlined_call_operand.vmem [shape: s32[24,1], index: 0, kind: input, shape index: {}]
  %s1 = inlined_call_operand.vmem [shape: s32[24,1], index: 1, kind: input, shape index: {}]
  %s2 = inlined_call_operand.vmem [shape: f32[16,128], index: 2, kind: input, shape index: {}]
  %s3 = inlined_call_operand.vmem [shape: f32[8,128], index: 3, kind: input, shape index: {}]
  %s4 = inlined_call_operand.hbm [shape: f32[24,128], index: 4, kind: output, shape index: {}]
  %s5 = sld [smem:[#allocation0]]
  $region26: #{tpu_custom_call.1} parent=0
    _
  %s7 = ssub.s32 1, %s5
  %s8 = scalar_select 0, %s7, %s5
  $region1: #{tpu_custom_call.1} parent=0
    #allocation2 [shape = 'u8[12288]{0}', space=vmem, size = 0x3000, scoped, tag = 'output window, operand 0, single buffered']
    #allocation3 [shape = 's32[1]{0}', space=sflag, size = 0x4, scoped, tag = 'scoped memory for tpu_custom_call.1']
    %9 = vsyncpa [#allocation3], 0
    // Predicated region
    $region2: #{tpu_custom_call.1} parent=1 // pred_check
      _
    $region3: #{tpu_custom_call.1} parent=1 // pred_check_branch
      %11 = sbr.rel (0) target = $region5
    $region4: #{tpu_custom_call.1} parent=1 // pred_region
      _
    $region5: #{tpu_custom_call.1} parent=1 // pred_fallthru
      _
    // Predicated region
    $region6: #{tpu_custom_call.1} parent=1 // pred_check
      _
    $region7: #{tpu_custom_call.1} parent=1 // pred_check_branch
      %13 = sbr.rel (0) target = $region9
    $region8: #{tpu_custom_call.1} parent=1 // pred_region
      _
    $region9: #{tpu_custom_call.1} parent=1 // pred_fallthru
      _
    // Predicated region
    $region10: #{tpu_custom_call.1} parent=1 // pred_check
      _
    $region11: #{tpu_custom_call.1} parent=1 // pred_check_branch
      %15 = sbr.rel (0) target = $region13
    $region12: #{tpu_custom_call.1} parent=1 // pred_region
      _
    $region13: #{tpu_custom_call.1} parent=1 // pred_fallthru
      _
    // Predicated region
    $region14: #{tpu_custom_call.1} parent=1 // pred_check
      _
    $region15: #{tpu_custom_call.1} parent=1 // pred_check_branch
      %17 = sbr.rel (0) target = $region17
    $region16: #{tpu_custom_call.1} parent=1 // pred_region
      _
    $region17: #{tpu_custom_call.1} parent=1 // pred_fallthru
      _
    %v18 = vld [vmem:[%s0] sm:$0xff]
    %v19 = vld [vmem:[%s0 + $0x8] sm:$0xff]
    %v20 = vld [vmem:[%s0 + $0x10] sm:$0xff]
    %v21 = vld [vmem:[%s1] sm:$0xff]
    %v22 = vld [vmem:[%s1 + $0x8] sm:$0xff]
    %v23 = vld [vmem:[%s1 + $0x10] sm:$0xff]
    %v24 = vlaneseq
    %v25 = vand.u32 %v24, 127
    %26 = vset.pattern.permute.xlu0 0
    %27 = vperm.xlu0 %26, %v18
    %v28 = vpop.permute.xlu0 %27
    %29 = vset.pattern.permute.xlu0 0
    %30 = vperm.xlu0 %29, %v19
    %v31 = vpop.permute.xlu0 %30
    %32 = vset.pattern.permute.xlu0 0
    %33 = vperm.xlu0 %32, %v20
    %v34 = vpop.permute.xlu0 %33
    %vm35 = vcmp.eq.s32.totalorder %v25, %v28
    %vm36 = vcmp.eq.s32.totalorder %v25, %v31
    %vm37 = vcmp.eq.s32.totalorder %v25, %v34
    %v38 = vsel %vm35, 1, 0
    %v39 = vsel %vm36, 1, 0
    %v40 = vsel %vm37, 1, 0
    %v41 = vcvt.s32.f32 %v38
    %v42 = vcvt.s32.f32 %v39
    %v43 = vcvt.s32.f32 %v40
    %44 = vset.pattern.permute.xlu0 0
    %45 = vperm.xlu0 %44, %v21
    %v46 = vpop.permute.xlu0 %45
    %47 = vset.pattern.permute.xlu0 0
    %48 = vperm.xlu0 %47, %v22
    %v49 = vpop.permute.xlu0 %48
    %50 = vset.pattern.permute.xlu0 0
    %51 = vperm.xlu0 %50, %v23
    %v52 = vpop.permute.xlu0 %51
    %vm53 = vcmp.eq.s32.totalorder %v25, %v46
    %vm54 = vcmp.eq.s32.totalorder %v25, %v49
    %vm55 = vcmp.eq.s32.totalorder %v25, %v52
    %v56 = vsel %vm53, 1, 0
    %v57 = vsel %vm54, 1, 0
    %v58 = vsel %vm55, 1, 0
    %v59 = vcvt.s32.f32 %v56
    %v60 = vcvt.s32.f32 %v57
    %v61 = vcvt.s32.f32 %v58
    %v62 = vld [vmem:[%s2] sm:$0xff]
    %v63 = vld [vmem:[%s2 + $0x8] sm:$0xff]
    %v64 = vld [vmem:[%s3] sm:$0xff]
    %vm65 = vcmask 64512
    %v67 = vsel %vm65, %v59, 0
    %v70 = vsel %vm65, %v60, 0
    %v73 = vsel %vm65, %v61, 0
    %75 = vmatprep.subr.mxu0 0.0
    %76 = vmatpush1.msra.mxu0 0.0
    %77 = vmatprep.subr.mxu0 0.0
    %78 = vmatpush1.msra.mxu0 0.0
    %79 = vmatprep.subr.mxu0 0.0
    %80 = vmatpush1.msra.mxu0 0.0
    %81 = vmatprep.subr.mxu0 0.0
    %82 = vmatpush1.msra.mxu0 0.0
    %83 = vmatprep.subr.mxu0 0.0
    %84 = vmatpush1.msra.mxu0 0.0
    %85 = vmatprep.subr.mxu0 0.0
    %86 = vmatpush1.msra.mxu0 0.0
    %87 = vmatprep.subr.mxu0 0.0
    %88 = vmatpush1.msra.mxu0 0.0
    %89 = vmatprep.subr.mxu0 0.0
    %90 = vmatpush1.msra.mxu0 0.0
    %91 = vmatprep.subr.mxu0 0.0
    %92 = vmatpush1.msra.mxu0 0.0
    %93 = vmatprep.subr.mxu0 0.0
    %94 = vmatpush1.msra.mxu0 0.0
    %95 = vmatprep.subr.mxu0 0.0
    %96 = vmatpush1.msra.mxu0 0.0
    %97 = vmatprep.subr.mxu0 0.0
    %98 = vmatpush1.msra.mxu0 0.0
    %99 = vmatprep.subr.mxu0 0.0
    %100 = vmatpush1.msra.mxu0 0.0
    %101 = vmatprep.subr.mxu0 0.0
    %102 = vmatpush1.msra.mxu0 0.0
    %103 = vmatprep.subr.mxu0 0.0
    %104 = vmatpush1.msra.mxu0 0.0
    %105 = vmatprep.subr.mxu0 0.0
    %106 = vmatpush1.msra.mxu0 %v64
    %107 = vmatprep.subr.mxu0 0.0
    %108 = vmatpush2.msra.mxu0 0.0
    %109 = vmatprep.subr.mxu0 0.0
    %110 = vmatpush2.msra.mxu0 0.0
    %111 = vmatprep.subr.mxu0 0.0
    %112 = vmatpush2.msra.mxu0 0.0
    %113 = vmatprep.subr.mxu0 0.0
    %114 = vmatpush2.msra.mxu0 0.0
    %115 = vmatprep.subr.mxu0 0.0
    %116 = vmatpush2.msra.mxu0 0.0
    %117 = vmatprep.subr.mxu0 0.0
    %118 = vmatpush2.msra.mxu0 0.0
    %119 = vmatprep.subr.mxu0 0.0
    %120 = vmatpush2.msra.mxu0 0.0
    %121 = vmatprep.subr.mxu0 0.0
    %122 = vmatpush2.msra.mxu0 0.0
    %123 = vmatprep.subr.mxu0 0.0
    %124 = vmatpush2.msra.mxu0 0.0
    %125 = vmatprep.subr.mxu0 0.0
    %126 = vmatpush2.msra.mxu0 0.0
    %127 = vmatprep.subr.mxu0 0.0
    %128 = vmatpush2.msra.mxu0 0.0
    %129 = vmatprep.subr.mxu0 0.0
    %130 = vmatpush2.msra.mxu0 0.0
    %131 = vmatprep.subr.mxu0 0.0
    %132 = vmatpush2.msra.mxu0 0.0
    %133 = vmatprep.subr.mxu0 0.0
    %134 = vmatpush2.msra.mxu0 0.0
    %135 = vmatprep.subr.mxu0 0.0
    %136 = vmatpush2.msra.mxu0 0.0
    %137 = vmatprep.subr.mxu0 0.0
    %138 = vmatpush2.msra.mxu0 0.0
    %139 = vmatprep.mubr.f32.mxu0 0.0
    %140 = vmatmul.mubr.f32.gmra.mxu0 %v67
    %v141 = vpop.f32.mrf.mxu0
    %v142 = vadd.f32 0.0, %v141
    %v143 = vpop.f32.mrf.mxu0
    %144 = vmatprep.mubr.f32.mxu0 0.0
    %145 = vmatmul.mubr.f32.gmra.mxu0 %v70
    %v146 = vpop.f32.mrf.mxu0
    %v147 = vadd.f32 0.0, %v146
    %v148 = vpop.f32.mrf.mxu0
    %149 = vmatprep.mubr.f32.mxu0 0.0
    %150 = vmatmul.mubr.f32.gmra.mxu0 %v73
    %v151 = vpop.f32.mrf.mxu0
    %v152 = vadd.f32 0.0, %v151
    %v153 = vpop.f32.mrf.mxu0
    %154 = vdwg.mxu0
    %vm155 = vcmask 130048
    %v157 = vsel %vm155, %v41, 0
    %v160 = vsel %vm155, %v42, 0
    %v163 = vsel %vm155, %v43, 0
    %165 = vmatprep.subr.mxu0 0.0
    %166 = vmatpush1.msra.mxu0 0.0
    %167 = vmatprep.subr.mxu0 0.0
    %168 = vmatpush1.msra.mxu0 0.0
    %169 = vmatprep.subr.mxu0 0.0
    %170 = vmatpush1.msra.mxu0 0.0
    %171 = vmatprep.subr.mxu0 0.0
    %172 = vmatpush1.msra.mxu0 0.0
    %173 = vmatprep.subr.mxu0 0.0
    %174 = vmatpush1.msra.mxu0 0.0
    %175 = vmatprep.subr.mxu0 0.0
    %176 = vmatpush1.msra.mxu0 0.0
    %177 = vmatprep.subr.mxu0 0.0
    %178 = vmatpush1.msra.mxu0 0.0
    %179 = vmatprep.subr.mxu0 0.0
    %180 = vmatpush1.msra.mxu0 0.0
    %181 = vmatprep.subr.mxu0 0.0
    %182 = vmatpush1.msra.mxu0 0.0
    %183 = vmatprep.subr.mxu0 0.0
    %184 = vmatpush1.msra.mxu0 0.0
    %185 = vmatprep.subr.mxu0 0.0
    %186 = vmatpush1.msra.mxu0 0.0
    %187 = vmatprep.subr.mxu0 0.0
    %188 = vmatpush1.msra.mxu0 0.0
    %189 = vmatprep.subr.mxu0 0.0
    %190 = vmatpush1.msra.mxu0 0.0
    %191 = vmatprep.subr.mxu0 0.0
    %192 = vmatpush1.msra.mxu0 0.0
    %193 = vmatprep.subr.mxu0 0.0
    %194 = vmatpush1.msra.mxu0 %v63
    %195 = vmatprep.subr.mxu0 0.0
    %196 = vmatpush1.msra.mxu0 %v62
    %197 = vmatprep.subr.mxu0 0.0
    %198 = vmatpush2.msra.mxu0 0.0
    %199 = vmatprep.subr.mxu0 0.0
    %200 = vmatpush2.msra.mxu0 0.0
    %201 = vmatprep.subr.mxu0 0.0
    %202 = vmatpush2.msra.mxu0 0.0
    %203 = vmatprep.subr.mxu0 0.0
    %204 = vmatpush2.msra.mxu0 0.0
    %205 = vmatprep.subr.mxu0 0.0
    %206 = vmatpush2.msra.mxu0 0.0
    %207 = vmatprep.subr.mxu0 0.0
    %208 = vmatpush2.msra.mxu0 0.0
    %209 = vmatprep.subr.mxu0 0.0
    %210 = vmatpush2.msra.mxu0 0.0
    %211 = vmatprep.subr.mxu0 0.0
    %212 = vmatpush2.msra.mxu0 0.0
    %213 = vmatprep.subr.mxu0 0.0
    %214 = vmatpush2.msra.mxu0 0.0
    %215 = vmatprep.subr.mxu0 0.0
    %216 = vmatpush2.msra.mxu0 0.0
    %217 = vmatprep.subr.mxu0 0.0
    %218 = vmatpush2.msra.mxu0 0.0
    %219 = vmatprep.subr.mxu0 0.0
    %220 = vmatpush2.msra.mxu0 0.0
    %221 = vmatprep.subr.mxu0 0.0
    %222 = vmatpush2.msra.mxu0 0.0
    %223 = vmatprep.subr.mxu0 0.0
    %224 = vmatpush2.msra.mxu0 0.0
    %225 = vmatprep.subr.mxu0 0.0
    %226 = vmatpush2.msra.mxu0 0.0
    %227 = vmatprep.subr.mxu0 0.0
    %228 = vmatpush2.msra.mxu0 0.0
    %229 = vmatprep.mubr.f32.mxu0 0.0
    %230 = vmatmul.mubr.f32.gmra.mxu0 %v157
    %v231 = vpop.f32.mrf.mxu0
    %v232 = vadd.f32 %v142, %v231
    %v233 = vpop.f32.mrf.mxu0
    %234 = vmatprep.mubr.f32.mxu0 0.0
    %235 = vmatmul.mubr.f32.gmra.mxu0 %v160
    %v236 = vpop.f32.mrf.mxu0
    %v237 = vadd.f32 %v147, %v236
    %v238 = vpop.f32.mrf.mxu0
    %239 = vmatprep.mubr.f32.mxu0 0.0
    %240 = vmatmul.mubr.f32.gmra.mxu0 %v163
    %v241 = vpop.f32.mrf.mxu0
    %v242 = vadd.f32 %v152, %v241
    %v243 = vpop.f32.mrf.mxu0
    %244 = vdwg.mxu0
    %245 = vst [vmem:[#allocation2] sm:$0xff] %v232
    %246 = vst [vmem:[#allocation2 + $0x8] sm:$0xff] %v237
    %247 = vst [vmem:[#allocation2 + $0x10] sm:$0xff] %v242
    // Predicated region
    $region18: #{tpu_custom_call.1} parent=1 // pred_check
      _
    $region19: #{tpu_custom_call.1} parent=1 // pred_check_branch
      %249 = sbr.rel (0) target = $region21
    $region20: #{tpu_custom_call.1} parent=1 // pred_region
      %s251 = ssub.s32 384, 384
      %252 = vsyncadd [#allocation3], %s251
      %s253 = sshll.u32 [#allocation2], 4
      %s254 = int_to_ptr.vmem [resolvable:$true] %s253
      %259 = dma.vmem_to_hbm [thread:$0]  %s254, 384, %s4, [#allocation3], 128, 128, 8
    $region21: #{tpu_custom_call.1} parent=1 // pred_fallthru
      _
    // Predicated region
    $region22: #{tpu_custom_call.1} parent=1 // pred_check
      _
    $region23: #{tpu_custom_call.1} parent=1 // pred_check_branch
      %261 = sbr.rel (0) target = $region25
    $region24: #{tpu_custom_call.1} parent=1 // pred_region
      %262 = dma.done [#allocation3], 384
    $region25: #{tpu_custom_call.1} parent=1 // pred_fallthru
      _
    %263 = vsyncpa [#allocation3], 1

</llo_original>
